<compile_context>
chip_gen: v7x
topology: tpu7x:2x2x1
jax: 0.10.0
libtpu: 0.0.40
codegen_flags: <defaults>
</compile_context>

<pallas_src>
import jax
import jax.numpy as jnp
from jax import lax
from jax.experimental import pallas as pl
from jax.experimental.pallas import tpu as pltpu


def _conv_mm_kernel(w_ref, b_ref, x_ref, o_ref):
    """One 128-aligned column block of the im2col GEMM per grid step.

    w_ref: (C, 9C)  bf16 -- folded conv weights (tap-major along K), resident
    b_ref: (C, 1)   f32  -- bias, resident
    x_ref: (9C, bc) bf16 -- im2col patches for this column block
    o_ref: (C, bc)       -- output block (lane-dense, bc % 128 == 0)
    """
    acc = jnp.dot(w_ref[...], x_ref[...], preferred_element_type=jnp.float32)
    o_ref[...] = (acc + b_ref[...].astype(jnp.float32)).astype(o_ref.dtype)


def _choose_block_cols(total_cols, k_dim, elem_bytes, max_block_bytes=4 << 20):
    """Largest multiple-of-128 column block (<= 2048) whose input slab fits budget."""
    bc = 2048
    while bc > 128 and k_dim * bc * elem_bytes > max_block_bytes:
        bc //= 2
    cols_128 = ((total_cols + 127) // 128) * 128
    return min(bc, cols_128)


def downsample(x, weight, bias, *, scale_factor=2):
    """x: (N, C, H, W). weight: (C, C, 3, 3). bias: (C,). Returns (N, C, Ho, Wo)."""
    N, C, H, W = x.shape
    Co, Ci, KH, KW = weight.shape
    assert Co == C and Ci == C and KH == 3 and KW == 3
    s = scale_factor
    pad = 1
    Ho = (H + 2 * pad - KH) // s + 1
    Wo = (W + 2 * pad - KW) // s + 1
    K = KH * KW * C
    P = Ho * Wo
    total_cols = N * P

    # ---- Wrapper-side im2col (layout plumbing; keeps the kernel a pure GEMM). ----
    x_pad = jnp.pad(x, ((0, 0), (0, 0), (pad, pad), (pad, pad)))
    taps = [x_pad[:, :, kh:kh + s * Ho:s, kw:kw + s * Wo:s]           # (N, C, Ho, Wo)
            for kh in range(KH) for kw in range(KW)]
    patches = jnp.stack(taps, axis=0)                                 # (9, N, C, Ho, Wo)
    patches = jnp.transpose(patches, (0, 2, 1, 3, 4)).reshape(K, total_cols)

    # Folded weights: W2[co, (kh*KW + kw)*C + ci] = weight[co, ci, kh, kw].
    w2 = jnp.transpose(weight, (0, 2, 3, 1)).reshape(C, K)

    # Single-pass bf16 MXU operands; f32 accumulation happens inside the kernel.
    patches = patches.astype(jnp.bfloat16)
    w2 = w2.astype(jnp.bfloat16)
    b2 = bias.reshape(C, 1).astype(jnp.float32)

    # ---- Column-block tiling: lane-dense, 128-aligned output blocks. ----
    bc = _choose_block_cols(total_cols, K, elem_bytes=2)
    cols_padded = ((total_cols + bc - 1) // bc) * bc
    if cols_padded != total_cols:
        patches = jnp.pad(patches, ((0, 0), (0, cols_padded - total_cols)))

    out_itemsize = jnp.dtype(x.dtype).itemsize
    est = 2 * (K * bc * 2 + C * bc * out_itemsize) + 2 * (C * K * 2 + C * 4)
    vmem_limit = int(min(max(est * 3 // 2 + (1 << 20), 32 << 20), 64 << 20))

    out_flat = pl.pallas_call(
        _conv_mm_kernel,
        out_shape=jax.ShapeDtypeStruct((C, cols_padded), x.dtype),
        grid_spec=pltpu.PrefetchScalarGridSpec(
            num_scalar_prefetch=0,
            grid=(cols_padded // bc,),
            in_specs=[
                # Weights / bias: constant index_map -> DMA'd once, stay resident.
                pl.BlockSpec((C, K), lambda j: (0, 0)),
                pl.BlockSpec((C, 1), lambda j: (0, 0)),
                # im2col patches: one 128-aligned column block per step.
                pl.BlockSpec((K, bc), lambda j: (0, j)),
            ],
            out_specs=pl.BlockSpec((C, bc), lambda j: (0, j)),
        ),
        compiler_params=pltpu.CompilerParams(
            dimension_semantics=("parallel",),
            vmem_limit_bytes=vmem_limit),
    )(w2, b2, patches)

    out = out_flat[:, :total_cols].reshape(C, N, Ho, Wo)
    return jnp.transpose(out, (1, 0, 2, 3))


def _reference(x, weight, bias, scale_factor=2):
    out = lax.conv_general_dilated(
        x, weight,
        window_strides=(scale_factor, scale_factor),
        padding=((1, 1), (1, 1)),
        dimension_numbers=("NCHW", "OIHW", "NCHW"),
        precision=lax.Precision.HIGHEST)
    return out + bias[None, :, None, None]


if __name__ == "__main__":
    key = jax.random.PRNGKey(0)
    k1, k2, k3 = jax.random.split(key, 3)

    N, C, H, W = 2, 4, 16, 16
    scale_factor = 2

    x = jax.random.normal(k1, (N, C, H, W), dtype=jnp.float32)
    fan_in = C * 3 * 3
    weight = jax.random.normal(k2, (C, C, 3, 3), dtype=jnp.float32) / jnp.sqrt(fan_in)
    bias = 0.1 * jax.random.normal(k3, (C,), dtype=jnp.float32)

    out = downsample(x, weight, bias, scale_factor=scale_factor)
    jax.block_until_ready(out)

    ref = _reference(x, weight, bias, scale_factor)
    assert out.shape == (N, C, H // scale_factor, W // scale_factor), out.shape
    # Operands go through the MXU in bf16 (single pass) -> ~1e-2 relative tolerance.
    assert jnp.allclose(out, ref, atol=3e-2, rtol=3e-2), \
        float(jnp.max(jnp.abs(out - ref)))

    print("KERNEL_OK")
</pallas_src>

<mosaic_0001>
module attributes {stable_mosaic.version = 11 : i64} {
  func.func @_conv_mm_kernel(%arg0: i32, %arg1: memref<4x36xbf16, #tpu.memory_space<vmem>>, %arg2: memref<4x1xf32, #tpu.memory_space<vmem>>, %arg3: memref<36x128xbf16, #tpu.memory_space<vmem>>, %arg4: memref<4x128xf32, #tpu.memory_space<vmem>>) attributes {dimension_semantics = [#tpu.dimension_semantics<parallel>], iteration_bounds = array<i64: 1>, scalar_prefetch = 0 : i64, scratch_operands = 0 : i64, tpu.core_type = #tpu.core_type<tc>, window_params = [{pipeline_mode = #tpu.pipeline_mode<synchronous>, transform_indices = @transform_0, window_bounds = array<i64: 4, 36>}, {pipeline_mode = #tpu.pipeline_mode<synchronous>, transform_indices = @transform_1, window_bounds = array<i64: 4, 1>}, {transform_indices = @transform_2, window_bounds = array<i64: 36, 128>}, {transform_indices = @transform_3, window_bounds = array<i64: 4, 128>}]} {
    %c0 = arith.constant 0 : index
    %c0_0 = arith.constant 0 : index
    %0 = vector.load %arg1[%c0, %c0_0] : memref<4x36xbf16, #tpu.memory_space<vmem>>, vector<4x36xbf16>
    %c0_1 = arith.constant 0 : index
    %c0_2 = arith.constant 0 : index
    %1 = vector.load %arg3[%c0_1, %c0_2] : memref<36x128xbf16, #tpu.memory_space<vmem>>, vector<36x128xbf16>
    %cst = arith.constant dense<0.000000e+00> : vector<4x128xf32>
    %2 = tpu.matmul %0, %1, %cst {dimension_numbers = #tpu.dot_dimension_numbers<[1], [0], [0], [1], [0, 0, 1, 1], [], []>} : vector<4x36xbf16>, vector<36x128xbf16>, vector<4x128xf32> -> vector<4x128xf32>
    %c0_3 = arith.constant 0 : index
    %c0_4 = arith.constant 0 : index
    %3 = vector.load %arg2[%c0_3, %c0_4] : memref<4x1xf32, #tpu.memory_space<vmem>>, vector<4x1xf32>
    %4 = vector.broadcast %3 : vector<4x1xf32> to vector<4x128xf32>
    %5 = arith.addf %2, %4 : vector<4x128xf32>
    %c0_5 = arith.constant 0 : index
    %c0_6 = arith.constant 0 : index
    %6 = vector.load %arg4[%c0_5, %c0_6] : memref<4x128xf32, #tpu.memory_space<vmem>>, vector<4x128xf32>
    tpu.vector_store %arg4[%c0_5, %c0_6], %5 {strides = array<i32>} : memref<4x128xf32, #tpu.memory_space<vmem>>, vector<4x128xf32>,
    return
  }
  func.func @transform_0(%arg0: i32) -> (i32, i32) {
    %c0_i32 = arith.constant 0 : i32
    %c0_i32_0 = arith.constant 0 : i32
    %c0_i32_1 = arith.constant 0 : i32
    return %c0_i32, %c0_i32_0 : i32, i32
  }
  func.func @transform_1(%arg0: i32) -> (i32, i32) {
    %c0_i32 = arith.constant 0 : i32
    %c0_i32_0 = arith.constant 0 : i32
    %c0_i32_1 = arith.constant 0 : i32
    return %c0_i32, %c0_i32_0 : i32, i32
  }
  func.func @transform_2(%arg0: i32) -> (i32, i32) {
    %c0_i32 = arith.constant 0 : i32
    %c0_i32_0 = arith.constant 0 : i32
    return %c0_i32, %arg0 : i32, i32
  }
  func.func @transform_3(%arg0: i32) -> (i32, i32) {
    %c0_i32 = arith.constant 0 : i32
    %c0_i32_0 = arith.constant 0 : i32
    return %c0_i32, %arg0 : i32, i32
  }
}

</mosaic_0001>

<llo_original>
// kernel: tpu_custom_call.1
$region0: #{tpu_custom_call.1}
  #allocation0 [shape = 'u32[]', space=smem, size = 0x4, offset = 0x4, fixed_abs, tag = 'smem constant byte address 0x4 - core index']
  #allocation1 [shape = 'u32[144,128]{1,0:T(1,128)}', space=vmem, size = 0x12000, scoped, tag = 'internal scratch']
  %s0 = inlined_call_operand.vmem [shape: bf16[4,36], index: 0, kind: input, shape index: {}]
  %s1 = inlined_call_operand.vmem [shape: f32[4,1], index: 1, kind: input, shape index: {}]
  %s2 = inlined_call_operand.hbm [shape: bf16[36,128], index: 2, kind: input, shape index: {}]
  %s3 = inlined_call_operand.hbm [shape: f32[4,128], index: 3, kind: output, shape index: {}]
  %s4 = sld [smem:[#allocation0]]
  $region26: #{tpu_custom_call.1} parent=0
    _
  %s6 = ssub.s32 1, %s4
  %s7 = scalar_select 0, %s6, %s4
  $region1: #{tpu_custom_call.1} parent=0
    #allocation2 [shape = 'u8[10240]{0}', space=vmem, size = 0x2800, scoped, tag = 'input window, operand 2, single buffered']
    #allocation3 [shape = 's32[1]{0}', space=sflag, size = 0x4, scoped, tag = 'scoped memory for tpu_custom_call.1']
    #allocation4 [shape = 's32[1]{0}', space=sflag, size = 0x4, scoped, tag = 'scoped memory for tpu_custom_call.1']
    #allocation5 [shape = 'u8[2048]{0}', space=vmem, size = 0x800, scoped, tag = 'output window, operand 0, single buffered']
    %8 = vsyncpa [#allocation3], 0
    %9 = vsyncpa [#allocation4], 0
    // Predicated region
    $region2: #{tpu_custom_call.1} parent=1 // pred_check
      _
    $region3: #{tpu_custom_call.1} parent=1 // pred_check_branch
      %11 = sbr.rel (0) target = $region5
    $region4: #{tpu_custom_call.1} parent=1 // pred_region
      _
    $region5: #{tpu_custom_call.1} parent=1 // pred_fallthru
      _
    // Predicated region
    $region6: #{tpu_custom_call.1} parent=1 // pred_check
      _
    $region7: #{tpu_custom_call.1} parent=1 // pred_check_branch
      %13 = sbr.rel (0) target = $region9
    $region8: #{tpu_custom_call.1} parent=1 // pred_region
      _
    $region9: #{tpu_custom_call.1} parent=1 // pred_fallthru
      _
    // Predicated region
    $region10: #{tpu_custom_call.1} parent=1 // pred_check
      _
    $region11: #{tpu_custom_call.1} parent=1 // pred_check_branch
      %15 = sbr.rel (0) target = $region13
    $region12: #{tpu_custom_call.1} parent=1 // pred_region
      %s17 = ssub.s32 320, 320
      %18 = vsyncadd [#allocation3], %s17
      %s19 = sshll.u32 [#allocation2], 4
      %s20 = int_to_ptr.vmem [resolvable:$true] %s19
      %25 = dma.hbm_to_vmem [thread:$0]  %s2, 320, %s20, [#allocation3], 64, 64, 4
    $region13: #{tpu_custom_call.1} parent=1 // pred_fallthru
      _
    // Predicated region
    $region14: #{tpu_custom_call.1} parent=1 // pred_check
      _
    $region15: #{tpu_custom_call.1} parent=1 // pred_check_branch
      %27 = sbr.rel (0) target = $region17
    $region16: #{tpu_custom_call.1} parent=1 // pred_region
      %28 = dma.done [#allocation3], 320
    $region17: #{tpu_custom_call.1} parent=1 // pred_fallthru
      _
    %v30 = vld [vmem:[%s0] sm:$0x3]
    %v31 = vld [vmem:[#allocation2] sm:$0xf]
    %v32 = vld [vmem:[#allocation2 + $0x4] sm:$0xf]
    %v33 = vld [vmem:[#allocation2 + $0x8] sm:$0xf]
    %v34 = vld [vmem:[#allocation2 + $0xc] sm:$0xf]
    %v35 = vld [vmem:[#allocation2 + $0x10] sm:$0x3]
    %v36 = vld [vmem:[%s1] sm:$0xf]
    %38 = vset.pattern.permute.xlu0 0
    %39 = vperm.xlu0 %38, %v36
    %v40 = vpop.permute.xlu0 %39
    %v47 = vunpack.c.l.b16 %v31
    %v48 = vunpack.c.l.b16 %v32
    %v49 = vunpack.c.l.b16 %v33
    %v50 = vunpack.c.l.b16 %v34
    %v51 = vunpack.c.l.b16 %v35
    %v52 = vpack.c.b16 %v48, %v47
    %v53 = vpack.c.b16 %v50, %v49
    %v54 = vpack.c.b16 %v51, %v51
    %vm57 = vcmask 293888
    %v59 = vsel %vm57, %v30, 0
    %vm61 = vcmask 1041408
    %v63 = vsel %vm61, %v54, 0
    %65 = vmatprep.subr.bf16.mxu0 0
    %66 = vmatpush1.bf16.msra.mxu0 %v52
    %67 = vmatprep.subr.bf16.mxu0 0
    %68 = vmatpush1.bf16.msra.mxu0 %v53
    %69 = vmatprep.subr.bf16.mxu0 0
    %70 = vmatpush1.bf16.msra.mxu0 %v63
    %71 = vmatprep.subr.bf16.mxu0 0
    %72 = vmatpush1.bf16.msra.mxu0 0
    %73 = vmatprep.subr.bf16.mxu0 0
    %74 = vmatpush1.bf16.msra.mxu0 0
    %75 = vmatprep.subr.bf16.mxu0 0
    %76 = vmatpush1.bf16.msra.mxu0 0
    %77 = vmatprep.subr.bf16.mxu0 0
    %78 = vmatpush1.bf16.msra.mxu0 0
    %79 = vmatprep.subr.bf16.mxu0 0
    %80 = vmatpush1.bf16.msra.mxu0 0
    %81 = vmatprep.subr.bf16.mxu0 0
    %82 = vmatpush1.bf16.msra.mxu0 0
    %83 = vmatprep.subr.bf16.mxu0 0
    %84 = vmatpush1.bf16.msra.mxu0 0
    %85 = vmatprep.subr.bf16.mxu0 0
    %86 = vmatpush1.bf16.msra.mxu0 0
    %87 = vmatprep.subr.bf16.mxu0 0
    %88 = vmatpush1.bf16.msra.mxu0 0
    %89 = vmatprep.subr.bf16.mxu0 0
    %90 = vmatpush1.bf16.msra.mxu0 0
    %91 = vmatprep.subr.bf16.mxu0 0
    %92 = vmatpush1.bf16.msra.mxu0 0
    %93 = vmatprep.subr.bf16.mxu0 0
    %94 = vmatpush1.bf16.msra.mxu0 0
    %95 = vmatprep.subr.bf16.mxu0 0
    %96 = vmatpush1.bf16.msra.mxu0 0
    %97 = vmatprep.mubr.bf16.mxu0 0
    %98 = vmatmul.mubr.bf16.gmra.mrb[0].mxu0 %v59
    %v99 = vpop.f32.mrb[0].mxu0
    %v100 = vadd.f32 %v40, %v99
    %v101 = vpop.f32.mrb[0].mxu0
    %v102 = vpop.f32.mrb[0].mxu0
    %v103 = vpop.f32.mrb[0].mxu0
    %104 = vdwg.mxu0
    %105 = vst [vmem:[#allocation5] sm:$0xf] %v100
    // Predicated region
    $region18: #{tpu_custom_call.1} parent=1 // pred_check
      _
    $region19: #{tpu_custom_call.1} parent=1 // pred_check_branch
      %107 = sbr.rel (0) target = $region21
    $region20: #{tpu_custom_call.1} parent=1 // pred_region
      %s109 = ssub.s32 64, 64
      %110 = vsyncadd [#allocation4], %s109
      %s112 = sshll.u32 [#allocation5], 4
      %s113 = int_to_ptr.vmem [resolvable:$true] %s112
      %115 = dma.vmem_to_hbm [thread:$0]  %s113, 64, %s3, [#allocation4]
    $region21: #{tpu_custom_call.1} parent=1 // pred_fallthru
      _
    // Predicated region
    $region22: #{tpu_custom_call.1} parent=1 // pred_check
      _
    $region23: #{tpu_custom_call.1} parent=1 // pred_check_branch
      %117 = sbr.rel (0) target = $region25
    $region24: #{tpu_custom_call.1} parent=1 // pred_region
      %118 = dma.done [#allocation4], 64
    $region25: #{tpu_custom_call.1} parent=1 // pred_fallthru
      _
    %119 = vsyncpa [#allocation3], 1
    %120 = vsyncpa [#allocation4], 1

</llo_original>
